<compile_context>
chip_gen: v6e
topology: v6e:2x2x1
jax: 0.10.0
libtpu: 0.0.40
codegen_flags: <defaults>
</compile_context>

<pallas_src>
import math

import jax
import jax.numpy as jnp
import numpy as np
from jax.experimental import pallas as pl
from jax.experimental.pallas import tpu as pltpu


def _round_up(x, m):
    return ((x + m - 1) // m) * m


def _cdiv(a, b):
    return -(-a // b)


# ---------------------------------------------------------------------------
# Kernel: three chained (banded-matmul + ReLU) layers on one (S-tile, batch-group).
# ---------------------------------------------------------------------------
def covnet_kernel(variant_ref, x_ref, m1_ref, m2_ref, m3_ref, out_ref):
    del variant_ref                                   # only used by the index_maps
    h0 = x_ref[0]                                     # (K1a, Nt) bf16, incl. ones row
    h1 = jnp.dot(m1_ref[0], h0, preferred_element_type=jnp.float32)
    h1 = jnp.maximum(h1, 0.0).astype(jnp.bfloat16)    # (R1a, Nt)
    h2 = jnp.dot(m2_ref[0], h1, preferred_element_type=jnp.float32)
    h2 = jnp.maximum(h2, 0.0).astype(jnp.bfloat16)    # (R2a, Nt)
    h3 = jnp.dot(m3_ref[0], h2, preferred_element_type=jnp.float32)
    out_ref[...] = jnp.maximum(h3, 0.0).astype(out_ref.dtype)   # (ts, Nt)


# ---------------------------------------------------------------------------
# One-time parameter preparation (host-side numpy; operators stored in bf16).
# ---------------------------------------------------------------------------
def _band_block(w, b, n_out, n_in, valid_out, n_out_pad, n_in_pad, ones_row_out):
    """Per-tile banded conv operator with the bias folded in against the input's ones row.

    w: (Co, Ci, 3) taps; b: (Co,).  Local 'valid' conv: out row j reads in rows j+k, k=0..2.
    valid_out[j]==False -> that global row is outside [0, S): zero band AND bias so the
    next layer sees exact zero padding.  ones_row_out (or None): row that carries the
    input's ones row forward with value 1 (bias source for the next layer).
    """
    Co, Ci, K = w.shape
    ones_col = Ci * n_in
    M = np.zeros((n_out_pad, n_in_pad), np.float32)
    j = np.arange(n_out)
    v = valid_out.astype(np.float32)
    for co in range(Co):
        rows = co * n_out + j
        for ci in range(Ci):
            for k in range(K):
                M[rows, ci * n_in + j + k] = w[co, ci, k] * v
        M[rows, ones_col] = b[co] * v
    if ones_row_out is not None:
        M[ones_row_out, ones_col] = 1.0
    return M


def prepare_covnet_params(params, S, ts=None):
    """Precompute (once per (params, S)) the per-tile banded operators."""
    (w1, b1), (w2, b2), (w3, b3) = params
    w1 = np.asarray(w1, np.float32)[:, :, :, 0]       # (16, 1, 3)
    w2 = np.asarray(w2, np.float32)[:, :, :, 0]       # (32, 16, 3)
    w3 = np.asarray(w3, np.float32)[:, :, :, 0]       # (1, 32, 3)
    b1, b2, b3 = (np.asarray(b, np.float32) for b in (b1, b2, b3))

    if ts is None:
        # Keep the layer-2 operator (the big one) small enough for v7x's 64 MiB VMEM.
        ts = min(_round_up(S, 8), 64)
    assert ts % 8 == 0
    T = _cdiv(S, ts)

    n1_out, n1_in = ts + 4, ts + 6                    # layer-1 'valid' band on the x window
    n2_out, n2_in = ts + 2, ts + 4
    n3_out, n3_in = ts, ts + 2
    K1a = _round_up(1 * n1_in + 1, 8)                 # x window rows + ones row, rounded
    R1a = _round_up(16 * n1_out + 1, 8)
    R2a = _round_up(32 * n2_out + 1, 8)

    # Per-tile row-validity masks (global row in [0, S)).  Tiles with identical masks share
    # one operator variant -> all interior tiles collapse onto a single resident block.
    def tile_masks(t):
        g1 = t * ts - 2 + np.arange(n1_out)
        g2 = t * ts - 1 + np.arange(n2_out)
        g3 = t * ts + np.arange(n3_out)
        return np.concatenate([(g1 >= 0) & (g1 < S),
                               (g2 >= 0) & (g2 < S),
                               (g3 >= 0) & (g3 < S)])

    sig = np.stack([tile_masks(t) for t in range(T)], axis=0)
    uniq, inv = np.unique(sig, axis=0, return_inverse=True)
    inv = np.asarray(inv).reshape(-1).astype(np.int32)

    m1s, m2s, m3s = [], [], []
    for v in range(uniq.shape[0]):
        row = uniq[v]
        v1 = row[:n1_out]
        v2 = row[n1_out:n1_out + n2_out]
        v3 = row[n1_out + n2_out:]
        m1s.append(_band_block(w1, b1, n1_out, n1_in, v1, R1a, K1a, 16 * n1_out))
        m2s.append(_band_block(w2, b2, n2_out, n2_in, v2, R2a, R1a, 32 * n2_out))
        m3s.append(_band_block(w3, b3, n3_out, n3_in, v3, n3_out, R2a, None))

    return dict(
        S=S, ts=ts, T=T, K1=n1_in, K1a=K1a,
        variant=jnp.asarray(inv),
        M1=jnp.asarray(np.stack(m1s), jnp.bfloat16),
        M2=jnp.asarray(np.stack(m2s), jnp.bfloat16),
        M3=jnp.asarray(np.stack(m3s), jnp.bfloat16),
    )


def _pick_batch_group(B, D):
    """Batch elements folded into the lane dim per grid step (lane-dense, 128-aligned)."""
    if B * D <= 512:
        return B                                      # single group -> block is full width
    bt = max(1, 256 // D)
    while (bt * D) % 128 != 0 and bt < B:
        bt += 1
    return bt if (bt * D) % 128 == 0 else B


# ---------------------------------------------------------------------------
# Forward pass (matches CovNet.forward(hidden_state, labels); labels unused).
# ---------------------------------------------------------------------------
def covnet_forward(prep, hidden_state, labels=None):
    del labels
    B, S, D = hidden_state.shape
    assert S == prep["S"], "prepare_covnet_params was built for a different S"
    ts, T, K1, K1a = prep["ts"], prep["T"], prep["K1"], prep["K1a"]
    S_pad = T * ts

    Bt = _pick_batch_group(B, D)
    G = _cdiv(B, Bt)
    Bp = G * Bt
    Nt, Np = Bt * D, Bp * D

    # Layout plumbing (wrapper-side): batch -> lanes, S tiles with a 3-row zero halo.
    xb = jnp.transpose(hidden_state, (1, 0, 2)).reshape(S, B * D)
    if Bp > B:
        xb = jnp.pad(xb, ((0, 0), (0, (Bp - B) * D)))
    xp = jnp.pad(xb, ((3, 3 + S_pad - S), (0, 0)))                     # zero halo / S pad
    xt = jnp.stack([xp[t * ts: t * ts + K1] for t in range(T)], axis=0)  # (T, K1, Np)
    aug = jnp.concatenate(
        [xt,
         jnp.ones((T, 1, Np), xt.dtype),                                # ones row (bias src)
         jnp.zeros((T, K1a - K1 - 1, Np), xt.dtype)], axis=1).astype(jnp.bfloat16)

    v_r1a, v_k1a = prep["M1"].shape[1], prep["M1"].shape[2]
    v_r2a = prep["M2"].shape[1]

    conv_flat = pl.pallas_call(
        covnet_kernel,
        out_shape=jax.ShapeDtypeStruct((S_pad, Np), hidden_state.dtype),
        grid_spec=pltpu.PrefetchScalarGridSpec(
            num_scalar_prefetch=1,                    # per-tile operator-variant table
            grid=(T, G),                              # (S tiles, batch groups)
            in_specs=[
                pl.BlockSpec((1, K1a, Nt), lambda t, g, var: (t, 0, g)),
                pl.BlockSpec((1, v_r1a, v_k1a), lambda t, g, var: (var[t], 0, 0)),
                pl.BlockSpec((1, v_r2a, v_r1a), lambda t, g, var: (var[t], 0, 0)),
                pl.BlockSpec((1, ts, v_r2a), lambda t, g, var: (var[t], 0, 0)),
            ],
            out_specs=pl.BlockSpec((ts, Nt), lambda t, g, var: (t, g)),
        ),
        compiler_params=pltpu.CompilerParams(
            dimension_semantics=("parallel", "parallel"),
            vmem_limit_bytes=64 * 1024 * 1024),
    )(prep["variant"], aug, prep["M1"], prep["M2"], prep["M3"])

    conv = conv_flat[:S].reshape(S, Bp, D)[:, :B, :].transpose(1, 0, 2)  # (B, S, D)
    return jnp.concatenate([hidden_state, conv], axis=2)                 # cat along dim 2


# ---------------------------------------------------------------------------
# Deterministic PyTorch-like init and a pure-JAX reference.
# ---------------------------------------------------------------------------
def init_params(key):
    def conv_init(k, co, ci):
        kw, kb = jax.random.split(k)
        bound = 1.0 / math.sqrt(ci * 3 * 1)
        w = jax.random.uniform(kw, (co, ci, 3, 1), jnp.float32, -bound, bound)
        b = jax.random.uniform(kb, (co,), jnp.float32, -bound, bound)
        return w, b
    k1, k2, k3 = jax.random.split(key, 3)
    return (conv_init(k1, 16, 1), conv_init(k2, 32, 16), conv_init(k3, 1, 32))


def ref_forward(params, x):
    """Reference reproducing the PyTorch forward, with weights/bias/input rounded to bf16
    to match the kernel's storage dtype (accumulation stays f32 in both)."""
    q = lambda a: a.astype(jnp.bfloat16).astype(jnp.float32)
    h = q(x)[:, None, :, :]                                            # (B,1,S,D) NCHW
    for (w, b) in params:
        h = jax.lax.conv_general_dilated(
            h, q(w), window_strides=(1, 1), padding=((1, 1), (0, 0)),
            dimension_numbers=("NCHW", "OIHW", "NCHW"))
        h = jnp.maximum(h + q(b)[None, :, None, None], 0.0)
    return jnp.concatenate([x, h[:, 0]], axis=2)


if __name__ == "__main__":
    key = jax.random.PRNGKey(0)
    kx, kp, kx2 = jax.random.split(key, 3)
    params = init_params(kp)

    # Config 1: the module's nominal small shapes (single tile, single batch group).
    B, S, D = 2, 8, 32
    hidden_state = jax.random.normal(kx, (B, S, D), jnp.float32)
    labels = jnp.zeros((B, S), jnp.int32)        # unused by the forward (as in PyTorch)
    prep = prepare_covnet_params(params, S)
    out = jax.block_until_ready(covnet_forward(prep, hidden_state, labels))
    assert out.shape == (B, S, 2 * D)
    ref = ref_forward(params, hidden_state)
    np.testing.assert_allclose(np.asarray(out), np.asarray(ref), rtol=2e-2, atol=2e-2)

    # Config 2: exercises multi-tile banding (halo, boundary variants, S padding).
    B2, S2, D2 = 3, 20, 32
    x2 = jax.random.normal(kx2, (B2, S2, D2), jnp.float32)
    prep2 = prepare_covnet_params(params, S2, ts=8)     # 3 tiles, 3 operator variants
    out2 = jax.block_until_ready(covnet_forward(prep2, x2))
    ref2 = ref_forward(params, x2)
    np.testing.assert_allclose(np.asarray(out2), np.asarray(ref2), rtol=2e-2, atol=2e-2)

    print("KERNEL_OK")
</pallas_src>

<mosaic_0001>
module attributes {stable_mosaic.version = 11 : i64} {
  func.func @covnet_kernel(%arg0: i32, %arg1: i32, %arg2: memref<1xi32, #tpu.memory_space<smem>>, %arg3: memref<1x16x64xbf16, #tpu.memory_space<vmem>>, %arg4: memref<1x200x16xbf16, #tpu.memory_space<vmem>>, %arg5: memref<1x328x200xbf16, #tpu.memory_space<vmem>>, %arg6: memref<1x8x328xbf16, #tpu.memory_space<vmem>>, %arg7: memref<8x64xf32, #tpu.memory_space<vmem>>) attributes {dimension_semantics = [#tpu.dimension_semantics<parallel>, #tpu.dimension_semantics<parallel>], iteration_bounds = array<i64: 1, 1>, scalar_prefetch = 1 : i64, scratch_operands = 0 : i64, tpu.core_type = #tpu.core_type<tc>, window_params = [{transform_indices = @transform_0, window_bounds = array<i64: 1, 16, 64>}, {transform_indices = @transform_1, window_bounds = array<i64: 1, 200, 16>}, {transform_indices = @transform_2, window_bounds = array<i64: 1, 328, 200>}, {transform_indices = @transform_3, window_bounds = array<i64: 1, 8, 328>}, {transform_indices = @transform_4, window_bounds = array<i64: 8, 64>}]} {
    %c0 = arith.constant 0 : index
    %c0_0 = arith.constant 0 : index
    %c0_1 = arith.constant 0 : index
    %0 = vector.load %arg3[%c0, %c0_0, %c0_1] : memref<1x16x64xbf16, #tpu.memory_space<vmem>>, vector<1x16x64xbf16>
    %1 = vector.shape_cast %0 : vector<1x16x64xbf16> to vector<16x64xbf16>
    %c0_2 = arith.constant 0 : index
    %c0_3 = arith.constant 0 : index
    %c0_4 = arith.constant 0 : index
    %2 = vector.load %arg4[%c0_2, %c0_3, %c0_4] : memref<1x200x16xbf16, #tpu.memory_space<vmem>>, vector<1x200x16xbf16>
    %3 = vector.shape_cast %2 : vector<1x200x16xbf16> to vector<200x16xbf16>
    %cst = arith.constant dense<0.000000e+00> : vector<200x64xf32>
    %4 = tpu.matmul %3, %1, %cst {dimension_numbers = #tpu.dot_dimension_numbers<[1], [0], [0], [1], [0, 0, 1, 1], [], []>} : vector<200x16xbf16>, vector<16x64xbf16>, vector<200x64xf32> -> vector<200x64xf32>
    %cst_5 = arith.constant 0.000000e+00 : f32
    %5 = vector.broadcast %cst_5 : f32 to vector<200x64xf32>
    %6 = arith.maximumf %4, %5 : vector<200x64xf32>
    %7 = arith.truncf %6 : vector<200x64xf32> to vector<200x64xbf16>
    %c0_6 = arith.constant 0 : index
    %c0_7 = arith.constant 0 : index
    %c0_8 = arith.constant 0 : index
    %8 = vector.load %arg5[%c0_6, %c0_7, %c0_8] : memref<1x328x200xbf16, #tpu.memory_space<vmem>>, vector<1x328x200xbf16>
    %9 = vector.shape_cast %8 : vector<1x328x200xbf16> to vector<328x200xbf16>
    %cst_9 = arith.constant dense<0.000000e+00> : vector<328x64xf32>
    %10 = tpu.matmul %9, %7, %cst_9 {dimension_numbers = #tpu.dot_dimension_numbers<[1], [0], [0], [1], [0, 0, 1, 1], [], []>} : vector<328x200xbf16>, vector<200x64xbf16>, vector<328x64xf32> -> vector<328x64xf32>
    %cst_10 = arith.constant 0.000000e+00 : f32
    %11 = vector.broadcast %cst_10 : f32 to vector<328x64xf32>
    %12 = arith.maximumf %10, %11 : vector<328x64xf32>
    %13 = arith.truncf %12 : vector<328x64xf32> to vector<328x64xbf16>
    %c0_11 = arith.constant 0 : index
    %c0_12 = arith.constant 0 : index
    %c0_13 = arith.constant 0 : index
    %14 = vector.load %arg6[%c0_11, %c0_12, %c0_13] : memref<1x8x328xbf16, #tpu.memory_space<vmem>>, vector<1x8x328xbf16>
    %15 = vector.shape_cast %14 : vector<1x8x328xbf16> to vector<8x328xbf16>
    %cst_14 = arith.constant dense<0.000000e+00> : vector<8x64xf32>
    %16 = tpu.matmul %15, %13, %cst_14 {dimension_numbers = #tpu.dot_dimension_numbers<[1], [0], [0], [1], [0, 0, 1, 1], [], []>} : vector<8x328xbf16>, vector<328x64xbf16>, vector<8x64xf32> -> vector<8x64xf32>
    %cst_15 = arith.constant 0.000000e+00 : f32
    %17 = vector.broadcast %cst_15 : f32 to vector<8x64xf32>
    %18 = arith.maximumf %16, %17 : vector<8x64xf32>
    %c0_16 = arith.constant 0 : index
    %c0_17 = arith.constant 0 : index
    %19 = vector.load %arg7[%c0_16, %c0_17] : memref<8x64xf32, #tpu.memory_space<vmem>>, vector<8x64xf32>
    tpu.vector_store %arg7[%c0_16, %c0_17], %18 {strides = array<i32>} : memref<8x64xf32, #tpu.memory_space<vmem>>, vector<8x64xf32>,
    return
  }
  func.func @transform_0(%arg0: i32, %arg1: i32, %arg2: memref<1xi32, #tpu.memory_space<smem>>) -> (i32, i32, i32) {
    %c0_i32 = arith.constant 0 : i32
    %c0_i32_0 = arith.constant 0 : i32
    return %arg0, %c0_i32, %arg1 : i32, i32, i32
  }
  func.func @transform_1(%arg0: i32, %arg1: i32, %arg2: memref<1xi32, #tpu.memory_space<smem>>) -> (i32, i32, i32) {
    %0 = arith.index_cast %arg0 : i32 to index
    %1 = memref.load %arg2[%0] : memref<1xi32, #tpu.memory_space<smem>>
    %c0_i32 = arith.constant 0 : i32
    %c0_i32_0 = arith.constant 0 : i32
    %c0_i32_1 = arith.constant 0 : i32
    return %1, %c0_i32, %c0_i32_0 : i32, i32, i32
  }
  func.func @transform_2(%arg0: i32, %arg1: i32, %arg2: memref<1xi32, #tpu.memory_space<smem>>) -> (i32, i32, i32) {
    %0 = arith.index_cast %arg0 : i32 to index
    %1 = memref.load %arg2[%0] : memref<1xi32, #tpu.memory_space<smem>>
    %c0_i32 = arith.constant 0 : i32
    %c0_i32_0 = arith.constant 0 : i32
    %c0_i32_1 = arith.constant 0 : i32
    return %1, %c0_i32, %c0_i32_0 : i32, i32, i32
  }
  func.func @transform_3(%arg0: i32, %arg1: i32, %arg2: memref<1xi32, #tpu.memory_space<smem>>) -> (i32, i32, i32) {
    %0 = arith.index_cast %arg0 : i32 to index
    %1 = memref.load %arg2[%0] : memref<1xi32, #tpu.memory_space<smem>>
    %c0_i32 = arith.constant 0 : i32
    %c0_i32_0 = arith.constant 0 : i32
    %c0_i32_1 = arith.constant 0 : i32
    return %1, %c0_i32, %c0_i32_0 : i32, i32, i32
  }
  func.func @transform_4(%arg0: i32, %arg1: i32, %arg2: memref<1xi32, #tpu.memory_space<smem>>) -> (i32, i32) {
    %c0_i32 = arith.constant 0 : i32
    return %arg0, %arg1 : i32, i32
  }
}

</mosaic_0001>

<llo_original>
// kernel: tpu_custom_call.1
$region0: #{tpu_custom_call.1}
  #allocation0 [shape = 'u32[]', space=smem, size = 0x4, offset = 0x4, fixed_abs, tag = 'smem constant byte address 0x4 - core index']
  #allocation1 [shape = 'u32[144,128]{1,0:T(1,128)}', space=vmem, size = 0x12000, scoped, tag = 'internal scratch']
  #allocation2 [shape = 's32[1]{0}', space=sflag, size = 0x4, scoped, tag = 'scoped memory for tpu_custom_call.1']
  #allocation3 [shape = 's32[1]{0:T(128)S(6)}', space=smem, size = 0x200, scoped, tag = 'prefetched SMEM operand 0']
  %s0 = inlined_call_operand.<no memory space> [shape: s32[1], index: 0, kind: input, shape index: {}]
  %s1 = inlined_call_operand.vmem [shape: bf16[1,16,64], index: 1, kind: input, shape index: {}]
  %s2 = inlined_call_operand.vmem [shape: bf16[1,200,16], index: 2, kind: input, shape index: {}]
  %s3 = inlined_call_operand.vmem [shape: bf16[1,328,200], index: 3, kind: input, shape index: {}]
  %s4 = inlined_call_operand.vmem [shape: bf16[1,8,328], index: 4, kind: input, shape index: {}]
  %s5 = inlined_call_operand.hbm [shape: f32[8,64], index: 5, kind: output, shape index: {}]
  %s6 = sld [smem:[#allocation0]]
  $region26: #{tpu_custom_call.1} parent=0
    _
  %s8 = ssub.s32 1, %s6
  %s9 = scalar_select 0, %s8, %s6
  %10 = sst [smem:[#allocation3]] %s0
  $region1: #{tpu_custom_call.1} parent=0
    #allocation4 [shape = 'u8[4096]{0}', space=vmem, size = 0x1000, scoped, tag = 'output window, operand 0, single buffered']
    #allocation5 [shape = 's32[1]{0}', space=sflag, size = 0x4, scoped, tag = 'scoped memory for tpu_custom_call.1']
    %11 = vsyncpa [#allocation5], 0
    // Predicated region
    $region2: #{tpu_custom_call.1} parent=1 // pred_check
      _
    $region3: #{tpu_custom_call.1} parent=1 // pred_check_branch
      %13 = sbr.rel (0) target = $region5
    $region4: #{tpu_custom_call.1} parent=1 // pred_region
      _
    $region5: #{tpu_custom_call.1} parent=1 // pred_fallthru
      _
    // Predicated region
    $region6: #{tpu_custom_call.1} parent=1 // pred_check
      _
    $region7: #{tpu_custom_call.1} parent=1 // pred_check_branch
      %15 = sbr.rel (0) target = $region9
    $region8: #{tpu_custom_call.1} parent=1 // pred_region
      %s16 = sld [smem:[#allocation3]]
      %p17 = scmp.lt.s32.totalorder %s16, 0
      %s18 = scalar_select %p17, %s16, 0
      %s19 = smul.addr %s18, 25
      %s20 = smul.addr %s19, 4
      %s21 = scalar_lea.vmem %s2, %s20
      %s22 = sld [smem:[#allocation3]]
    $region9: #{tpu_custom_call.1} parent=1 // pred_fallthru
      _
    // Predicated region
    $region10: #{tpu_custom_call.1} parent=1 // pred_check
      _
    $region11: #{tpu_custom_call.1} parent=1 // pred_check_branch
      %24 = sbr.rel (0) target = $region13
    $region12: #{tpu_custom_call.1} parent=1 // pred_region
      %s25 = sld [smem:[#allocation3]]
      %p26 = scmp.lt.s32.totalorder %s25, 0
      %s27 = scalar_select %p26, %s25, 0
      %s28 = smul.addr %s27, 82
      %s29 = smul.addr %s28, 4
      %s30 = scalar_lea.vmem %s3, %s29
      %s31 = sld [smem:[#allocation3]]
    $region13: #{tpu_custom_call.1} parent=1 // pred_fallthru
      _
    // Predicated region
    $region14: #{tpu_custom_call.1} parent=1 // pred_check
      _
    $region15: #{tpu_custom_call.1} parent=1 // pred_check_branch
      %33 = sbr.rel (0) target = $region17
    $region16: #{tpu_custom_call.1} parent=1 // pred_region
      %s34 = sld [smem:[#allocation3]]
      %p35 = scmp.lt.s32.totalorder %s34, 0
      %s36 = scalar_select %p35, %s34, 0
      %s37 = smul.addr %s36, 3
      %s38 = smul.addr %s37, 4
      %s39 = scalar_lea.vmem %s4, %s38
      %s40 = sld [smem:[#allocation3]]
    $region17: #{tpu_custom_call.1} parent=1 // pred_fallthru
      _
    %s41 = sld [smem:[#allocation3]]
    %p42 = scmp.lt.s32.totalorder %s41, 0
    %s43 = scalar_select %p42, %s41, 0
    %s44 = smul.addr %s43, 25
    %s45 = smul.addr %s44, 4
    %s46 = scalar_lea.vmem %s2, %s45
    %s47 = sld [smem:[#allocation3]]
    %p48 = scmp.lt.s32.totalorder %s47, 0
    %s49 = scalar_select %p48, %s47, 0
    %s50 = smul.addr %s49, 82
    %s51 = smul.addr %s50, 4
    %s52 = scalar_lea.vmem %s3, %s51
    %s53 = sld [smem:[#allocation3]]
    %p54 = scmp.lt.s32.totalorder %s53, 0
    %s55 = scalar_select %p54, %s53, 0
    %s56 = smul.addr %s55, 3
    %s57 = smul.addr %s56, 4
    %s58 = scalar_lea.vmem %s4, %s57
    %s59 = sld [smem:[#allocation3]]
    %p60 = scmp.lt.s32.totalorder %s59, 0
    %s61 = scalar_select %p60, %s59, 0
    %s62 = smul.addr %s61, 25
    %s63 = smul.addr %s62, 4
    %s64 = scalar_lea.vmem %s2, %s63
    %s65 = sld [smem:[#allocation3]]
    %s66 = sld [smem:[#allocation3]]
    %p67 = scmp.lt.s32.totalorder %s66, 0
    %s68 = scalar_select %p67, %s66, 0
    %s69 = smul.addr %s68, 82
    %s70 = smul.addr %s69, 4
    %s71 = scalar_lea.vmem %s3, %s70
    %s72 = sld [smem:[#allocation3]]
    %s73 = sld [smem:[#allocation3]]
    %p74 = scmp.lt.s32.totalorder %s73, 0
    %s75 = scalar_select %p74, %s73, 0
    %s76 = smul.addr %s75, 3
    %s77 = smul.addr %s76, 4
    %s78 = scalar_lea.vmem %s4, %s77
    %s79 = sld [smem:[#allocation3]]
    %v81 = vld [vmem:[%s1] sm:$0xf]
    %v82 = vld [vmem:[%s1 + $0x4] sm:$0xf]
    %v83 = vld [vmem:[%s64] sm:$0xf]
    %v84 = vld [vmem:[%s64 + $0x4] sm:$0xf]
    %v85 = vld [vmem:[%s64 + $0x8] sm:$0xf]
    %v86 = vld [vmem:[%s64 + $0xc] sm:$0xf]
    %v87 = vld [vmem:[%s64 + $0x10] sm:$0xf]
    %v88 = vld [vmem:[%s64 + $0x14] sm:$0xf]
    %v89 = vld [vmem:[%s64 + $0x18] sm:$0xf]
    %v90 = vld [vmem:[%s64 + $0x1c] sm:$0xf]
    %v91 = vld [vmem:[%s64 + $0x20] sm:$0xf]
    %v92 = vld [vmem:[%s64 + $0x24] sm:$0xf]
    %v93 = vld [vmem:[%s64 + $0x28] sm:$0xf]
    %v94 = vld [vmem:[%s64 + $0x2c] sm:$0xf]
    %v95 = vld [vmem:[%s64 + $0x30] sm:$0xf]
    %v96 = vld [vmem:[%s64 + $0x34] sm:$0xf]
    %v97 = vld [vmem:[%s64 + $0x38] sm:$0xf]
    %v98 = vld [vmem:[%s64 + $0x3c] sm:$0xf]
    %v99 = vld [vmem:[%s64 + $0x40] sm:$0xf]
    %v100 = vld [vmem:[%s64 + $0x44] sm:$0xf]
    %v101 = vld [vmem:[%s64 + $0x48] sm:$0xf]
    %v102 = vld [vmem:[%s64 + $0x4c] sm:$0xf]
    %v103 = vld [vmem:[%s64 + $0x50] sm:$0xf]
    %v104 = vld [vmem:[%s64 + $0x54] sm:$0xf]
    %v105 = vld [vmem:[%s64 + $0x58] sm:$0xf]
    %v106 = vld [vmem:[%s64 + $0x5c] sm:$0xf]
    %v107 = vld [vmem:[%s64 + $0x60] sm:$0xf]
    %v133 = vunpack.c.l.b16 %v83
    %v134 = vunpack.c.l.b16 %v84
    %v135 = vunpack.c.l.b16 %v85
    %v136 = vunpack.c.l.b16 %v86
    %v137 = vunpack.c.l.b16 %v87
    %v138 = vunpack.c.l.b16 %v88
    %v139 = vunpack.c.l.b16 %v89
    %v140 = vunpack.c.l.b16 %v90
    %v141 = vunpack.c.l.b16 %v91
    %v142 = vunpack.c.l.b16 %v92
    %v143 = vunpack.c.l.b16 %v93
    %v144 = vunpack.c.l.b16 %v94
    %v145 = vunpack.c.l.b16 %v95
    %v146 = vunpack.c.l.b16 %v96
    %v147 = vunpack.c.l.b16 %v97
    %v148 = vunpack.c.l.b16 %v98
    %v149 = vunpack.c.l.b16 %v99
    %v150 = vunpack.c.l.b16 %v100
    %v151 = vunpack.c.l.b16 %v101
    %v152 = vunpack.c.l.b16 %v102
    %v153 = vunpack.c.l.b16 %v103
    %v154 = vunpack.c.l.b16 %v104
    %v155 = vunpack.c.l.b16 %v105
    %v156 = vunpack.c.l.b16 %v106
    %v157 = vunpack.c.l.b16 %v107
    %v158 = vpack.c.b16 %v134, %v133
    %v159 = vpack.c.b16 %v136, %v135
    %v160 = vpack.c.b16 %v138, %v137
    %v161 = vpack.c.b16 %v140, %v139
    %v162 = vpack.c.b16 %v142, %v141
    %v163 = vpack.c.b16 %v144, %v143
    %v164 = vpack.c.b16 %v146, %v145
    %v165 = vpack.c.b16 %v148, %v147
    %v166 = vpack.c.b16 %v150, %v149
    %v167 = vpack.c.b16 %v152, %v151
    %v168 = vpack.c.b16 %v154, %v153
    %v169 = vpack.c.b16 %v156, %v155
    %v170 = vpack.c.b16 %v157, %v157
    %v173 = vunpack.c.l.b16 %v81
    %v174 = vunpack.c.l.b16 %v82
    %v175 = vpack.c.b16 %v174, %v173
    %vm177 = vcmask 130048
    %v179 = vsel %vm177, %v158, 0
    %v182 = vsel %vm177, %v159, 0
    %v185 = vsel %vm177, %v160, 0
    %v188 = vsel %vm177, %v161, 0
    %v191 = vsel %vm177, %v162, 0
    %v194 = vsel %vm177, %v163, 0
    %v197 = vsel %vm177, %v164, 0
    %v200 = vsel %vm177, %v165, 0
    %v203 = vsel %vm177, %v166, 0
    %v206 = vsel %vm177, %v167, 0
    %v209 = vsel %vm177, %v168, 0
    %v212 = vsel %vm177, %v169, 0
    %v215 = vsel %vm177, %v170, 0
    %217 = vmatprep.subr.bf16.mxu0 0
    %218 = vmatpush1.bf16.msra.mxu0 0
    %219 = vmatprep.subr.bf16.mxu0 0
    %220 = vmatpush1.bf16.msra.mxu0 0
    %221 = vmatprep.subr.bf16.mxu0 0
    %222 = vmatpush1.bf16.msra.mxu0 0
    %223 = vmatprep.subr.bf16.mxu0 0
    %224 = vmatpush1.bf16.msra.mxu0 0
    %225 = vmatprep.subr.bf16.mxu0 0
    %226 = vmatpush1.bf16.msra.mxu0 0
    %227 = vmatprep.subr.bf16.mxu0 0
    %228 = vmatpush1.bf16.msra.mxu0 0
    %229 = vmatprep.subr.bf16.mxu0 0
    %230 = vmatpush1.bf16.msra.mxu0 0
    %231 = vmatprep.subr.bf16.mxu0 0
    %232 = vmatpush1.bf16.msra.mxu0 %v175
    %233 = vmatprep.subr.bf16.mxu0 0
    %234 = vmatpush2.bf16.msra.mxu0 0
    %235 = vmatprep.subr.bf16.mxu0 0
    %236 = vmatpush2.bf16.msra.mxu0 0
    %237 = vmatprep.subr.bf16.mxu0 0
    %238 = vmatpush2.bf16.msra.mxu0 0
    %239 = vmatprep.subr.bf16.mxu0 0
    %240 = vmatpush2.bf16.msra.mxu0 0
    %241 = vmatprep.subr.bf16.mxu0 0
    %242 = vmatpush2.bf16.msra.mxu0 0
    %243 = vmatprep.subr.bf16.mxu0 0
    %244 = vmatpush2.bf16.msra.mxu0 0
    %245 = vmatprep.subr.bf16.mxu0 0
    %246 = vmatpush2.bf16.msra.mxu0 0
    %247 = vmatprep.subr.bf16.mxu0 0
    %248 = vmatpush2.bf16.msra.mxu0 0
    %249 = vmatprep.mubr.bf16.mxu0 0
    %250 = vmatmul.mubr.bf16.gmra.mxu0 %v179
    %v251 = vpop.f32.mrf.mxu0
    %v252 = vadd.f32 0.0, %v251
    %v253 = vpop.f32.mrf.mxu0
    %v254 = vpop.f32.mrf.mxu0
    %v255 = vadd.f32 0.0, %v254
    %v256 = vpop.f32.mrf.mxu0
    %257 = vmatprep.mubr.bf16.mxu0 0
    %258 = vmatmul.mubr.bf16.gmra.mxu0 %v182
    %v259 = vpop.f32.mrf.mxu0
    %v260 = vadd.f32 0.0, %v259
    %v261 = vpop.f32.mrf.mxu0
    %v262 = vpop.f32.mrf.mxu0
    %v263 = vadd.f32 0.0, %v262
    %v264 = vpop.f32.mrf.mxu0
    %265 = vmatprep.mubr.bf16.mxu0 0
    %266 = vmatmul.mubr.bf16.gmra.mxu0 %v185
    %v267 = vpop.f32.mrf.mxu0
    %v268 = vadd.f32 0.0, %v267
    %v269 = vpop.f32.mrf.mxu0
    %v270 = vpop.f32.mrf.mxu0
    %v271 = vadd.f32 0.0, %v270
    %v272 = vpop.f32.mrf.mxu0
    %273 = vmatprep.mubr.bf16.mxu0 0
    %274 = vmatmul.mubr.bf16.gmra.mxu0 %v188
    %v275 = vpop.f32.mrf.mxu0
    %v276 = vadd.f32 0.0, %v275
    %v277 = vpop.f32.mrf.mxu0
    %v278 = vpop.f32.mrf.mxu0
    %v279 = vadd.f32 0.0, %v278
    %v280 = vpop.f32.mrf.mxu0
    %281 = vmatprep.mubr.bf16.mxu0 0
    %282 = vmatmul.mubr.bf16.gmra.mxu0 %v191
    %v283 = vpop.f32.mrf.mxu0
    %v284 = vadd.f32 0.0, %v283
    %v285 = vpop.f32.mrf.mxu0
    %v286 = vpop.f32.mrf.mxu0
    %v287 = vadd.f32 0.0, %v286
    %v288 = vpop.f32.mrf.mxu0
    %289 = vmatprep.mubr.bf16.mxu0 0
    %290 = vmatmul.mubr.bf16.gmra.mxu0 %v194
    %v291 = vpop.f32.mrf.mxu0
    %v292 = vadd.f32 0.0, %v291
    %v293 = vpop.f32.mrf.mxu0
    %v294 = vpop.f32.mrf.mxu0
    %v295 = vadd.f32 0.0, %v294
    %v296 = vpop.f32.mrf.mxu0
    %297 = vmatprep.mubr.bf16.mxu0 0
    %298 = vmatmul.mubr.bf16.gmra.mxu0 %v197
    %v299 = vpop.f32.mrf.mxu0
    %v300 = vadd.f32 0.0, %v299
    %v301 = vpop.f32.mrf.mxu0
    %v302 = vpop.f32.mrf.mxu0
    %v303 = vadd.f32 0.0, %v302
    %v304 = vpop.f32.mrf.mxu0
    %305 = vmatprep.mubr.bf16.mxu0 0
    %306 = vmatmul.mubr.bf16.gmra.mxu0 %v200
    %v307 = vpop.f32.mrf.mxu0
    %v308 = vadd.f32 0.0, %v307
    %v309 = vpop.f32.mrf.mxu0
    %v310 = vpop.f32.mrf.mxu0
    %v311 = vadd.f32 0.0, %v310
    %v312 = vpop.f32.mrf.mxu0
    %313 = vmatprep.mubr.bf16.mxu0 0
    %314 = vmatmul.mubr.bf16.gmra.mxu0 %v203
    %v315 = vpop.f32.mrf.mxu0
    %v316 = vadd.f32 0.0, %v315
    %v317 = vpop.f32.mrf.mxu0
    %v318 = vpop.f32.mrf.mxu0
    %v319 = vadd.f32 0.0, %v318
    %v320 = vpop.f32.mrf.mxu0
    %321 = vmatprep.mubr.bf16.mxu0 0
    %322 = vmatmul.mubr.bf16.gmra.mxu0 %v206
    %v323 = vpop.f32.mrf.mxu0
    %v324 = vadd.f32 0.0, %v323
    %v325 = vpop.f32.mrf.mxu0
    %v326 = vpop.f32.mrf.mxu0
    %v327 = vadd.f32 0.0, %v326
    %v328 = vpop.f32.mrf.mxu0
    %329 = vmatprep.mubr.bf16.mxu0 0
    %330 = vmatmul.mubr.bf16.gmra.mxu0 %v209
    %v331 = vpop.f32.mrf.mxu0
    %v332 = vadd.f32 0.0, %v331
    %v333 = vpop.f32.mrf.mxu0
    %v334 = vpop.f32.mrf.mxu0
    %v335 = vadd.f32 0.0, %v334
    %v336 = vpop.f32.mrf.mxu0
    %337 = vmatprep.mubr.bf16.mxu0 0
    %338 = vmatmul.mubr.bf16.gmra.mxu0 %v212
    %v339 = vpop.f32.mrf.mxu0
    %v340 = vadd.f32 0.0, %v339
    %v341 = vpop.f32.mrf.mxu0
    %v342 = vpop.f32.mrf.mxu0
    %v343 = vadd.f32 0.0, %v342
    %v344 = vpop.f32.mrf.mxu0
    %345 = vmatprep.mubr.bf16.mxu0 0
    %346 = vmatmul.mubr.bf16.gmra.mxu0 %v215
    %v347 = vpop.f32.mrf.mxu0
    %v348 = vadd.f32 0.0, %v347
    %v349 = vpop.f32.mrf.mxu0
    %v350 = vpop.f32.mrf.mxu0
    %v351 = vpop.f32.mrf.mxu0
    %352 = vdwg.mxu0
    %v353 = vmax.f32 %v252, 0.0
    %v354 = vmax.f32 %v255, 0.0
    %v355 = vmax.f32 %v260, 0.0
    %v356 = vmax.f32 %v263, 0.0
    %v357 = vmax.f32 %v268, 0.0
    %v358 = vmax.f32 %v271, 0.0
    %v359 = vmax.f32 %v276, 0.0
    %v360 = vmax.f32 %v279, 0.0
    %v361 = vmax.f32 %v284, 0.0
    %v362 = vmax.f32 %v287, 0.0
    %v363 = vmax.f32 %v292, 0.0
    %v364 = vmax.f32 %v295, 0.0
    %v365 = vmax.f32 %v300, 0.0
    %v366 = vmax.f32 %v303, 0.0
    %v367 = vmax.f32 %v308, 0.0
    %v368 = vmax.f32 %v311, 0.0
    %v369 = vmax.f32 %v316, 0.0
    %v370 = vmax.f32 %v319, 0.0
    %v371 = vmax.f32 %v324, 0.0
    %v372 = vmax.f32 %v327, 0.0
    %v373 = vmax.f32 %v332, 0.0
    %v374 = vmax.f32 %v335, 0.0
    %v375 = vmax.f32 %v340, 0.0
    %v376 = vmax.f32 %v343, 0.0
    %v377 = vmax.f32 %v348, 0.0
    %v378 = vpack.c.bf16 %v354, %v353
    %v379 = vpack.c.bf16 %v356, %v355
    %v380 = vpack.c.bf16 %v358, %v357
    %v381 = vpack.c.bf16 %v360, %v359
    %v382 = vpack.c.bf16 %v362, %v361
    %v383 = vpack.c.bf16 %v364, %v363
    %v384 = vpack.c.bf16 %v366, %v365
    %v385 = vpack.c.bf16 %v368, %v367
    %v386 = vpack.c.bf16 %v370, %v369
    %v387 = vpack.c.bf16 %v372, %v371
    %v388 = vpack.c.bf16 %v374, %v373
    %v389 = vpack.c.bf16 %v376, %v375
    %v390 = vpack.c.bf16 %v377, %v377
    %v391 = vld [vmem:[%s71] sm:$0xff]
    %v392 = vld [vmem:[%s71 + $0x8] sm:$0xff]
    %v393 = vld [vmem:[%s71 + $0x10] sm:$0xff]
    %v394 = vld [vmem:[%s71 + $0x18] sm:$0xff]
    %v395 = vld [vmem:[%s71 + $0x20] sm:$0xff]
    %v396 = vld [vmem:[%s71 + $0x28] sm:$0xff]
    %v397 = vld [vmem:[%s71 + $0x30] sm:$0xff]
    %v398 = vld [vmem:[%s71 + $0x38] sm:$0xff]
    %v399 = vld [vmem:[%s71 + $0x40] sm:$0xff]
    %v400 = vld [vmem:[%s71 + $0x48] sm:$0xff]
    %v401 = vld [vmem:[%s71 + $0x50] sm:$0xff]
    %v402 = vld [vmem:[%s71 + $0x58] sm:$0xff]
    %v403 = vld [vmem:[%s71 + $0x60] sm:$0xff]
    %v404 = vld [vmem:[%s71 + $0x68] sm:$0xff]
    %v405 = vld [vmem:[%s71 + $0x70] sm:$0xff]
    %v406 = vld [vmem:[%s71 + $0x78] sm:$0xff]
    %v407 = vld [vmem:[%s71 + $0x80] sm:$0xff]
    %v408 = vld [vmem:[%s71 + $0x88] sm:$0xff]
    %v409 = vld [vmem:[%s71 + $0x90] sm:$0xff]
    %v410 = vld [vmem:[%s71 + $0x98] sm:$0xff]
    %v411 = vld [vmem:[%s71 + $0xa0] sm:$0xff]
    %v412 = vld [vmem:[%s71 + $0xa8] sm:$0xff]
    %v413 = vld [vmem:[%s71 + $0xb0] sm:$0xff]
    %v414 = vld [vmem:[%s71 + $0xb8] sm:$0xff]
    %v415 = vld [vmem:[%s71 + $0xc0] sm:$0xff]
    %v416 = vld [vmem:[%s71 + $0xc8] sm:$0xff]
    %v417 = vld [vmem:[%s71 + $0xd0] sm:$0xff]
    %v418 = vld [vmem:[%s71 + $0xd8] sm:$0xff]
    %v419 = vld [vmem:[%s71 + $0xe0] sm:$0xff]
    %v420 = vld [vmem:[%s71 + $0xe8] sm:$0xff]
    %v421 = vld [vmem:[%s71 + $0xf0] sm:$0xff]
    %v422 = vld [vmem:[%s71 + $0xf8] sm:$0xff]
    %v423 = vld [vmem:[%s71 + $0x100] sm:$0xff]
    %v424 = vld [vmem:[%s71 + $0x108] sm:$0xff]
    %v425 = vld [vmem:[%s71 + $0x110] sm:$0xff]
    %v426 = vld [vmem:[%s71 + $0x118] sm:$0xff]
    %v427 = vld [vmem:[%s71 + $0x120] sm:$0xff]
    %v428 = vld [vmem:[%s71 + $0x128] sm:$0xff]
    %v429 = vld [vmem:[%s71 + $0x130] sm:$0xff]
    %v430 = vld [vmem:[%s71 + $0x138] sm:$0xff]
    %v431 = vld [vmem:[%s71 + $0x140] sm:$0xff]
    %v473 = vunpack.c.l.b16 %v391
    %v474 = vunpack.c.h.b16 %v391
    %v475 = vunpack.c.l.b16 %v392
    %v476 = vunpack.c.h.b16 %v392
    %v477 = vunpack.c.l.b16 %v393
    %v478 = vunpack.c.h.b16 %v393
    %v479 = vunpack.c.l.b16 %v394
    %v480 = vunpack.c.h.b16 %v394
    %v481 = vunpack.c.l.b16 %v395
    %v482 = vunpack.c.h.b16 %v395
    %v483 = vunpack.c.l.b16 %v396
    %v484 = vunpack.c.h.b16 %v396
    %v485 = vunpack.c.l.b16 %v397
    %v486 = vunpack.c.h.b16 %v397
    %v487 = vunpack.c.l.b16 %v398
    %v488 = vunpack.c.h.b16 %v398
    %v489 = vunpack.c.l.b16 %v399
    %v490 = vunpack.c.h.b16 %v399
    %v491 = vunpack.c.l.b16 %v400
    %v492 = vunpack.c.h.b16 %v400
    %v493 = vunpack.c.l.b16 %v401
    %v494 = vunpack.c.h.b16 %v401
    %v495 = vunpack.c.l.b16 %v402
    %v496 = vunpack.c.h.b16 %v402
    %v497 = vunpack.c.l.b16 %v403
    %v498 = vunpack.c.h.b16 %v403
    %v499 = vunpack.c.l.b16 %v404
    %v500 = vunpack.c.h.b16 %v404
    %v501 = vunpack.c.l.b16 %v405
    %v502 = vunpack.c.h.b16 %v405
    %v503 = vunpack.c.l.b16 %v406
    %v504 = vunpack.c.h.b16 %v406
    %v505 = vunpack.c.l.b16 %v407
    %v506 = vunpack.c.h.b16 %v407
    %v507 = vunpack.c.l.b16 %v408
    %v508 = vunpack.c.h.b16 %v408
    %v509 = vunpack.c.l.b16 %v409
    %v510 = vunpack.c.h.b16 %v409
    %v511 = vunpack.c.l.b16 %v410
    %v512 = vunpack.c.h.b16 %v410
    %v513 = vunpack.c.l.b16 %v411
    %v514 = vunpack.c.h.b16 %v411
    %v515 = vunpack.c.l.b16 %v412
    %v516 = vunpack.c.h.b16 %v412
    %v517 = vunpack.c.l.b16 %v413
    %v518 = vunpack.c.h.b16 %v413
    %v519 = vunpack.c.l.b16 %v414
    %v520 = vunpack.c.h.b16 %v414
    %v521 = vunpack.c.l.b16 %v415
    %v522 = vunpack.c.h.b16 %v415
    %v523 = vunpack.c.l.b16 %v416
    %v524 = vunpack.c.h.b16 %v416
    %v525 = vunpack.c.l.b16 %v417
    %v526 = vunpack.c.h.b16 %v417
    %v527 = vunpack.c.l.b16 %v418
    %v528 = vunpack.c.h.b16 %v418
    %v529 = vunpack.c.l.b16 %v419
    %v530 = vunpack.c.h.b16 %v419
    %v531 = vunpack.c.l.b16 %v420
    %v532 = vunpack.c.h.b16 %v420
    %v533 = vunpack.c.l.b16 %v421
    %v534 = vunpack.c.h.b16 %v421
    %v535 = vunpack.c.l.b16 %v422
    %v536 = vunpack.c.h.b16 %v422
    %v537 = vunpack.c.l.b16 %v423
    %v538 = vunpack.c.h.b16 %v423
    %v539 = vunpack.c.l.b16 %v424
    %v540 = vunpack.c.h.b16 %v424
    %v541 = vunpack.c.l.b16 %v425
    %v542 = vunpack.c.h.b16 %v425
    %v543 = vunpack.c.l.b16 %v426
    %v544 = vunpack.c.h.b16 %v426
    %v545 = vunpack.c.l.b16 %v427
    %v546 = vunpack.c.h.b16 %v427
    %v547 = vunpack.c.l.b16 %v428
    %v548 = vunpack.c.h.b16 %v428
    %v549 = vunpack.c.l.b16 %v429
    %v550 = vunpack.c.h.b16 %v429
    %v551 = vunpack.c.l.b16 %v430
    %v552 = vunpack.c.h.b16 %v430
    %v553 = vunpack.c.l.b16 %v431
    %v554 = vunpack.c.h.b16 %v431
    %v555 = vpack.c.b16 %v475, %v473
    %v556 = vpack.c.b16 %v476, %v474
    %v557 = vpack.c.b16 %v479, %v477
    %v558 = vpack.c.b16 %v480, %v478
    %v559 = vpack.c.b16 %v483, %v481
    %v560 = vpack.c.b16 %v484, %v482
    %v561 = vpack.c.b16 %v487, %v485
    %v562 = vpack.c.b16 %v488, %v486
    %v563 = vpack.c.b16 %v491, %v489
    %v564 = vpack.c.b16 %v492, %v490
    %v565 = vpack.c.b16 %v495, %v493
    %v566 = vpack.c.b16 %v496, %v494
    %v567 = vpack.c.b16 %v499, %v497
    %v568 = vpack.c.b16 %v500, %v498
    %v569 = vpack.c.b16 %v503, %v501
    %v570 = vpack.c.b16 %v504, %v502
    %v571 = vpack.c.b16 %v507, %v505
    %v572 = vpack.c.b16 %v508, %v506
    %v573 = vpack.c.b16 %v511, %v509
    %v574 = vpack.c.b16 %v512, %v510
    %v575 = vpack.c.b16 %v515, %v513
    %v576 = vpack.c.b16 %v516, %v514
    %v577 = vpack.c.b16 %v519, %v517
    %v578 = vpack.c.b16 %v520, %v518
    %v579 = vpack.c.b16 %v523, %v521
    %v580 = vpack.c.b16 %v524, %v522
    %v581 = vpack.c.b16 %v527, %v525
    %v582 = vpack.c.b16 %v528, %v526
    %v583 = vpack.c.b16 %v531, %v529
    %v584 = vpack.c.b16 %v532, %v530
    %v585 = vpack.c.b16 %v535, %v533
    %v586 = vpack.c.b16 %v536, %v534
    %v587 = vpack.c.b16 %v539, %v537
    %v588 = vpack.c.b16 %v540, %v538
    %v589 = vpack.c.b16 %v543, %v541
    %v590 = vpack.c.b16 %v544, %v542
    %v591 = vpack.c.b16 %v547, %v545
    %v592 = vpack.c.b16 %v548, %v546
    %v593 = vpack.c.b16 %v551, %v549
    %v594 = vpack.c.b16 %v552, %v550
    %v595 = vpack.c.b16 %v553, %v553
    %v596 = vpack.c.b16 %v554, %v554
    %vm618 = vcmask 588800
    %v620 = vsel %vm618, %v556, 0
    %v623 = vsel %vm618, %v558, 0
    %v626 = vsel %vm618, %v560, 0
    %v629 = vsel %vm618, %v562, 0
    %v632 = vsel %vm618, %v564, 0
    %v635 = vsel %vm618, %v566, 0
    %v638 = vsel %vm618, %v568, 0
    %v641 = vsel %vm618, %v570, 0
    %v644 = vsel %vm618, %v572, 0
    %v647 = vsel %vm618, %v574, 0
    %v650 = vsel %vm618, %v576, 0
    %v653 = vsel %vm618, %v578, 0
    %v656 = vsel %vm618, %v580, 0
    %v659 = vsel %vm618, %v582, 0
    %v662 = vsel %vm618, %v584, 0
    %v665 = vsel %vm618, %v586, 0
    %v668 = vsel %vm618, %v588, 0
    %v671 = vsel %vm618, %v590, 0
    %v674 = vsel %vm618, %v592, 0
    %v677 = vsel %vm618, %v594, 0
    %v680 = vsel %vm618, %v596, 0
    %vm682 = vcmask 1043456
    %v684 = vsel %vm682, %v390, 0
    %686 = vmatprep.subr.bf16.mxu0 0
    %687 = vmatpush1.bf16.msra.mxu0 %v385
    %688 = vmatprep.subr.bf16.mxu0 0
    %689 = vmatpush1.bf16.msra.mxu0 %v384
    %690 = vmatprep.subr.bf16.mxu0 0
    %691 = vmatpush1.bf16.msra.mxu0 %v383
    %692 = vmatprep.subr.bf16.mxu0 0
    %693 = vmatpush1.bf16.msra.mxu0 %v382
    %694 = vmatprep.subr.bf16.mxu0 0
    %695 = vmatpush1.bf16.msra.mxu0 %v381
    %696 = vmatprep.subr.bf16.mxu0 0
    %697 = vmatpush1.bf16.msra.mxu0 %v380
    %698 = vmatprep.subr.bf16.mxu0 0
    %699 = vmatpush1.bf16.msra.mxu0 %v379
    %700 = vmatprep.subr.bf16.mxu0 0
    %701 = vmatpush1.bf16.msra.mxu0 %v378
    %702 = vmatprep.subr.bf16.mxu0 0
    %703 = vmatpush2.bf16.msra.mxu0 0
    %704 = vmatprep.subr.bf16.mxu0 0
    %705 = vmatpush2.bf16.msra.mxu0 0
    %706 = vmatprep.subr.bf16.mxu0 0
    %707 = vmatpush2.bf16.msra.mxu0 0
    %708 = vmatprep.subr.bf16.mxu0 0
    %709 = vmatpush2.bf16.msra.mxu0 %v684
    %710 = vmatprep.subr.bf16.mxu0 0
    %711 = vmatpush2.bf16.msra.mxu0 %v389
    %712 = vmatprep.subr.bf16.mxu0 0
    %713 = vmatpush2.bf16.msra.mxu0 %v388
    %714 = vmatprep.subr.bf16.mxu0 0
    %715 = vmatpush2.bf16.msra.mxu0 %v387
    %716 = vmatprep.subr.bf16.mxu0 0
    %717 = vmatpush2.bf16.msra.mxu0 %v386
    %718 = vmatprep.mubr.bf16.mxu0 %v620
    %719 = vmatmul.mubr.bf16.gmra.mxu0 %v555
    %v720 = vpop.f32.mrf.mxu0
    %v721 = vadd.f32 0.0, %v720
    %v722 = vpop.f32.mrf.mxu0
    %v723 = vpop.f32.mrf.mxu0
    %v724 = vadd.f32 0.0, %v723
    %v725 = vpop.f32.mrf.mxu0
    %726 = vmatprep.mubr.bf16.mxu0 %v623
    %727 = vmatmul.mubr.bf16.gmra.mxu0 %v557
    %v728 = vpop.f32.mrf.mxu0
    %v729 = vadd.f32 0.0, %v728
    %v730 = vpop.f32.mrf.mxu0
    %v731 = vpop.f32.mrf.mxu0
    %v732 = vadd.f32 0.0, %v731
    %v733 = vpop.f32.mrf.mxu0
    %734 = vmatprep.mubr.bf16.mxu0 %v626
    %735 = vmatmul.mubr.bf16.gmra.mxu0 %v559
    %v736 = vpop.f32.mrf.mxu0
    %v737 = vadd.f32 0.0, %v736
    %v738 = vpop.f32.mrf.mxu0
    %v739 = vpop.f32.mrf.mxu0
    %v740 = vadd.f32 0.0, %v739
    %v741 = vpop.f32.mrf.mxu0
    %742 = vmatprep.mubr.bf16.mxu0 %v629
    %743 = vmatmul.mubr.bf16.gmra.mxu0 %v561
    %v744 = vpop.f32.mrf.mxu0
    %v745 = vadd.f32 0.0, %v744
    %v746 = vpop.f32.mrf.mxu0
    %v747 = vpop.f32.mrf.mxu0
    %v748 = vadd.f32 0.0, %v747
    %v749 = vpop.f32.mrf.mxu0
    %750 = vmatprep.mubr.bf16.mxu0 %v632
    %751 = vmatmul.mubr.bf16.gmra.mxu0 %v563
    %v752 = vpop.f32.mrf.mxu0
    %v753 = vadd.f32 0.0, %v752
    %v754 = vpop.f32.mrf.mxu0
    %v755 = vpop.f32.mrf.mxu0
    %v756 = vadd.f32 0.0, %v755
    %v757 = vpop.f32.mrf.mxu0
    %758 = vmatprep.mubr.bf16.mxu0 %v635
    %759 = vmatmul.mubr.bf16.gmra.mxu0 %v565
    %v760 = vpop.f32.mrf.mxu0
    %v761 = vadd.f32 0.0, %v760
    %v762 = vpop.f32.mrf.mxu0
    %v763 = vpop.f32.mrf.mxu0
    %v764 = vadd.f32 0.0, %v763
    %v765 = vpop.f32.mrf.mxu0
    %766 = vmatprep.mubr.bf16.mxu0 %v638
    %767 = vmatmul.mubr.bf16.gmra.mxu0 %v567
    %v768 = vpop.f32.mrf.mxu0
    %v769 = vadd.f32 0.0, %v768
    %v770 = vpop.f32.mrf.mxu0
    %v771 = vpop.f32.mrf.mxu0
    %v772 = vadd.f32 0.0, %v771
    %v773 = vpop.f32.mrf.mxu0
    %774 = vmatprep.mubr.bf16.mxu0 %v641
    %775 = vmatmul.mubr.bf16.gmra.mxu0 %v569
    %v776 = vpop.f32.mrf.mxu0
    %v777 = vadd.f32 0.0, %v776
    %v778 = vpop.f32.mrf.mxu0
    %v779 = vpop.f32.mrf.mxu0
    %v780 = vadd.f32 0.0, %v779
    %v781 = vpop.f32.mrf.mxu0
    %782 = vmatprep.mubr.bf16.mxu0 %v644
    %783 = vmatmul.mubr.bf16.gmra.mxu0 %v571
    %v784 = vpop.f32.mrf.mxu0
    %v785 = vadd.f32 0.0, %v784
    %v786 = vpop.f32.mrf.mxu0
    %v787 = vpop.f32.mrf.mxu0
    %v788 = vadd.f32 0.0, %v787
    %v789 = vpop.f32.mrf.mxu0
    %790 = vmatprep.mubr.bf16.mxu0 %v647
    %791 = vmatmul.mubr.bf16.gmra.mxu0 %v573
    %v792 = vpop.f32.mrf.mxu0
    %v793 = vadd.f32 0.0, %v792
    %v794 = vpop.f32.mrf.mxu0
    %v795 = vpop.f32.mrf.mxu0
    %v796 = vadd.f32 0.0, %v795
    %v797 = vpop.f32.mrf.mxu0
    %798 = vmatprep.mubr.bf16.mxu0 %v650
    %799 = vmatmul.mubr.bf16.gmra.mxu0 %v575
    %v800 = vpop.f32.mrf.mxu0
    %v801 = vadd.f32 0.0, %v800
    %v802 = vpop.f32.mrf.mxu0
    %v803 = vpop.f32.mrf.mxu0
    %v804 = vadd.f32 0.0, %v803
    %v805 = vpop.f32.mrf.mxu0
    %806 = vmatprep.mubr.bf16.mxu0 %v653
    %807 = vmatmul.mubr.bf16.gmra.mxu0 %v577
    %v808 = vpop.f32.mrf.mxu0
    %v809 = vadd.f32 0.0, %v808
    %v810 = vpop.f32.mrf.mxu0
    %v811 = vpop.f32.mrf.mxu0
    %v812 = vadd.f32 0.0, %v811
    %v813 = vpop.f32.mrf.mxu0
    %814 = vmatprep.mubr.bf16.mxu0 %v656
    %815 = vmatmul.mubr.bf16.gmra.mxu0 %v579
    %v816 = vpop.f32.mrf.mxu0
    %v817 = vadd.f32 0.0, %v816
    %v818 = vpop.f32.mrf.mxu0
    %v819 = vpop.f32.mrf.mxu0
    %v820 = vadd.f32 0.0, %v819
    %v821 = vpop.f32.mrf.mxu0
    %822 = vmatprep.mubr.bf16.mxu0 %v659
    %823 = vmatmul.mubr.bf16.gmra.mxu0 %v581
    %v824 = vpop.f32.mrf.mxu0
    %v825 = vadd.f32 0.0, %v824
    %v826 = vpop.f32.mrf.mxu0
    %v827 = vpop.f32.mrf.mxu0
    %v828 = vadd.f32 0.0, %v827
    %v829 = vpop.f32.mrf.mxu0
    %830 = vmatprep.mubr.bf16.mxu0 %v662
    %831 = vmatmul.mubr.bf16.gmra.mxu0 %v583
    %v832 = vpop.f32.mrf.mxu0
    %v833 = vadd.f32 0.0, %v832
    %v834 = vpop.f32.mrf.mxu0
    %v835 = vpop.f32.mrf.mxu0
    %v836 = vadd.f32 0.0, %v835
    %v837 = vpop.f32.mrf.mxu0
    %838 = vmatprep.mubr.bf16.mxu0 %v665
    %839 = vmatmul.mubr.bf16.gmra.mxu0 %v585
    %v840 = vpop.f32.mrf.mxu0
    %v841 = vadd.f32 0.0, %v840
    %v842 = vpop.f32.mrf.mxu0
    %v843 = vpop.f32.mrf.mxu0
    %v844 = vadd.f32 0.0, %v843
    %v845 = vpop.f32.mrf.mxu0
    %846 = vmatprep.mubr.bf16.mxu0 %v668
    %847 = vmatmul.mubr.bf16.gmra.mxu0 %v587
    %v848 = vpop.f32.mrf.mxu0
    %v849 = vadd.f32 0.0, %v848
    %v850 = vpop.f32.mrf.mxu0
    %v851 = vpop.f32.mrf.mxu0
    %v852 = vadd.f32 0.0, %v851
    %v853 = vpop.f32.mrf.mxu0
    %854 = vmatprep.mubr.bf16.mxu0 %v671
    %855 = vmatmul.mubr.bf16.gmra.mxu0 %v589
    %v856 = vpop.f32.mrf.mxu0
    %v857 = vadd.f32 0.0, %v856
    %v858 = vpop.f32.mrf.mxu0
    %v859 = vpop.f32.mrf.mxu0
    %v860 = vadd.f32 0.0, %v859
    %v861 = vpop.f32.mrf.mxu0
    %862 = vmatprep.mubr.bf16.mxu0 %v674
    %863 = vmatmul.mubr.bf16.gmra.mxu0 %v591
    %v864 = vpop.f32.mrf.mxu0
    %v865 = vadd.f32 0.0, %v864
    %v866 = vpop.f32.mrf.mxu0
    %v867 = vpop.f32.mrf.mxu0
    %v868 = vadd.f32 0.0, %v867
    %v869 = vpop.f32.mrf.mxu0
    %870 = vmatprep.mubr.bf16.mxu0 %v677
    %871 = vmatmul.mubr.bf16.gmra.mxu0 %v593
    %v872 = vpop.f32.mrf.mxu0
    %v873 = vadd.f32 0.0, %v872
    %v874 = vpop.f32.mrf.mxu0
    %v875 = vpop.f32.mrf.mxu0
    %v876 = vadd.f32 0.0, %v875
    %v877 = vpop.f32.mrf.mxu0
    %878 = vmatprep.mubr.bf16.mxu0 %v680
    %879 = vmatmul.mubr.bf16.gmra.mxu0 %v595
    %v880 = vpop.f32.mrf.mxu0
    %v881 = vadd.f32 0.0, %v880
    %v882 = vpop.f32.mrf.mxu0
    %v883 = vpop.f32.mrf.mxu0
    %v884 = vpop.f32.mrf.mxu0
    %885 = vdwg.mxu0
    %v886 = vmax.f32 %v721, 0.0
    %v887 = vmax.f32 %v724, 0.0
    %v888 = vmax.f32 %v729, 0.0
    %v889 = vmax.f32 %v732, 0.0
    %v890 = vmax.f32 %v737, 0.0
    %v891 = vmax.f32 %v740, 0.0
    %v892 = vmax.f32 %v745, 0.0
    %v893 = vmax.f32 %v748, 0.0
    %v894 = vmax.f32 %v753, 0.0
    %v895 = vmax.f32 %v756, 0.0
    %v896 = vmax.f32 %v761, 0.0
    %v897 = vmax.f32 %v764, 0.0
    %v898 = vmax.f32 %v769, 0.0
    %v899 = vmax.f32 %v772, 0.0
    %v900 = vmax.f32 %v777, 0.0
    %v901 = vmax.f32 %v780, 0.0
    %v902 = vmax.f32 %v785, 0.0
    %v903 = vmax.f32 %v788, 0.0
    %v904 = vmax.f32 %v793, 0.0
    %v905 = vmax.f32 %v796, 0.0
    %v906 = vmax.f32 %v801, 0.0
    %v907 = vmax.f32 %v804, 0.0
    %v908 = vmax.f32 %v809, 0.0
    %v909 = vmax.f32 %v812, 0.0
    %v910 = vmax.f32 %v817, 0.0
    %v911 = vmax.f32 %v820, 0.0
    %v912 = vmax.f32 %v825, 0.0
    %v913 = vmax.f32 %v828, 0.0
    %v914 = vmax.f32 %v833, 0.0
    %v915 = vmax.f32 %v836, 0.0
    %v916 = vmax.f32 %v841, 0.0
    %v917 = vmax.f32 %v844, 0.0
    %v918 = vmax.f32 %v849, 0.0
    %v919 = vmax.f32 %v852, 0.0
    %v920 = vmax.f32 %v857, 0.0
    %v921 = vmax.f32 %v860, 0.0
    %v922 = vmax.f32 %v865, 0.0
    %v923 = vmax.f32 %v868, 0.0
    %v924 = vmax.f32 %v873, 0.0
    %v925 = vmax.f32 %v876, 0.0
    %v926 = vmax.f32 %v881, 0.0
    %v927 = vpack.c.bf16 %v887, %v886
    %v928 = vpack.c.bf16 %v889, %v888
    %v929 = vpack.c.bf16 %v891, %v890
    %v930 = vpack.c.bf16 %v893, %v892
    %v931 = vpack.c.bf16 %v895, %v894
    %v932 = vpack.c.bf16 %v897, %v896
    %v933 = vpack.c.bf16 %v899, %v898
    %v934 = vpack.c.bf16 %v901, %v900
    %v935 = vpack.c.bf16 %v903, %v902
    %v936 = vpack.c.bf16 %v905, %v904
    %v937 = vpack.c.bf16 %v907, %v906
    %v938 = vpack.c.bf16 %v909, %v908
    %v939 = vpack.c.bf16 %v911, %v910
    %v940 = vpack.c.bf16 %v913, %v912
    %v941 = vpack.c.bf16 %v915, %v914
    %v942 = vpack.c.bf16 %v917, %v916
    %v943 = vpack.c.bf16 %v919, %v918
    %v944 = vpack.c.bf16 %v921, %v920
    %v945 = vpack.c.bf16 %v923, %v922
    %v946 = vpack.c.bf16 %v925, %v924
    %v947 = vpack.c.bf16 %v926, %v926
    %v948 = vld [vmem:[%s78] sm:$0xff]
    %v949 = vld [vmem:[%s78 + $0x8] sm:$0xf]
    %v952 = vunpack.c.l.b16 %v948
    %v953 = vunpack.c.h.b16 %v948
    %v954 = vunpack.c.l.b16 %v949
    %v955 = vpack.c.b16 %v952, %v952
    %v956 = vpack.c.b16 %v953, %v953
    %v957 = vpack.c.b16 %v954, %v954
    %v961 = vsel %vm618, %v957, 0
    %v964 = vsel %vm682, %v947, 0
    %966 = vmatprep.subr.bf16.mxu0 0
    %967 = vmatpush1.bf16.msra.mxu0 %v934
    %968 = vmatprep.subr.bf16.mxu0 0
    %969 = vmatpush1.bf16.msra.mxu0 %v933
    %970 = vmatprep.subr.bf16.mxu0 0
    %971 = vmatpush1.bf16.msra.mxu0 %v932
    %972 = vmatprep.subr.bf16.mxu0 0
    %973 = vmatpush1.bf16.msra.mxu0 %v931
    %974 = vmatprep.subr.bf16.mxu0 0
    %975 = vmatpush1.bf16.msra.mxu0 %v930
    %976 = vmatprep.subr.bf16.mxu0 0
    %977 = vmatpush1.bf16.msra.mxu0 %v929
    %978 = vmatprep.subr.bf16.mxu0 0
    %979 = vmatpush1.bf16.msra.mxu0 %v928
    %980 = vmatprep.subr.bf16.mxu0 0
    %981 = vmatpush1.bf16.msra.mxu0 %v927
    %982 = vmatprep.subr.bf16.mxu0 0
    %983 = vmatpush2.bf16.msra.mxu0 %v942
    %984 = vmatprep.subr.bf16.mxu0 0
    %985 = vmatpush2.bf16.msra.mxu0 %v941
    %986 = vmatprep.subr.bf16.mxu0 0
    %987 = vmatpush2.bf16.msra.mxu0 %v940
    %988 = vmatprep.subr.bf16.mxu0 0
    %989 = vmatpush2.bf16.msra.mxu0 %v939
    %990 = vmatprep.subr.bf16.mxu0 0
    %991 = vmatpush2.bf16.msra.mxu0 %v938
    %992 = vmatprep.subr.bf16.mxu0 0
    %993 = vmatpush2.bf16.msra.mxu0 %v937
    %994 = vmatprep.subr.bf16.mxu0 0
    %995 = vmatpush2.bf16.msra.mxu0 %v936
    %996 = vmatprep.subr.bf16.mxu0 0
    %997 = vmatpush2.bf16.msra.mxu0 %v935
    %998 = vmatprep.mubr.bf16.mxu0 %v956
    %999 = vmatmul.mubr.bf16.gmra.mxu0 %v955
    %v1000 = vpop.f32.mrf.mxu0
    %v1001 = vadd.f32 0.0, %v1000
    %v1002 = vpop.f32.mrf.mxu0
    %v1003 = vpop.f32.mrf.mxu0
    %v1004 = vpop.f32.mrf.mxu0
    %1005 = vdwg.mxu0
    %1006 = vmatprep.subr.bf16.mxu0 0
    %1007 = vmatpush1.bf16.msra.mxu0 0
    %1008 = vmatprep.subr.bf16.mxu0 0
    %1009 = vmatpush1.bf16.msra.mxu0 0
    %1010 = vmatprep.subr.bf16.mxu0 0
    %1011 = vmatpush1.bf16.msra.mxu0 0
    %1012 = vmatprep.subr.bf16.mxu0 0
    %1013 = vmatpush1.bf16.msra.mxu0 %v964
    %1014 = vmatprep.subr.bf16.mxu0 0
    %1015 = vmatpush1.bf16.msra.mxu0 %v946
    %1016 = vmatprep.subr.bf16.mxu0 0
    %1017 = vmatpush1.bf16.msra.mxu0 %v945
    %1018 = vmatprep.subr.bf16.mxu0 0
    %1019 = vmatpush1.bf16.msra.mxu0 %v944
    %1020 = vmatprep.subr.bf16.mxu0 0
    %1021 = vmatpush1.bf16.msra.mxu0 %v943
    %1022 = vmatprep.subr.bf16.mxu0 0
    %1023 = vmatpush2.bf16.msra.mxu0 0
    %1024 = vmatprep.subr.bf16.mxu0 0
    %1025 = vmatpush2.bf16.msra.mxu0 0
    %1026 = vmatprep.subr.bf16.mxu0 0
    %1027 = vmatpush2.bf16.msra.mxu0 0
    %1028 = vmatprep.subr.bf16.mxu0 0
    %1029 = vmatpush2.bf16.msra.mxu0 0
    %1030 = vmatprep.subr.bf16.mxu0 0
    %1031 = vmatpush2.bf16.msra.mxu0 0
    %1032 = vmatprep.subr.bf16.mxu0 0
    %1033 = vmatpush2.bf16.msra.mxu0 0
    %1034 = vmatprep.subr.bf16.mxu0 0
    %1035 = vmatpush2.bf16.msra.mxu0 0
    %1036 = vmatprep.subr.bf16.mxu0 0
    %1037 = vmatpush2.bf16.msra.mxu0 0
    %1038 = vmatprep.mubr.bf16.mxu0 0
    %1039 = vmatmul.mubr.bf16.gmra.mxu0 %v961
    %v1040 = vpop.f32.mrf.mxu0
    %v1041 = vadd.f32 %v1001, %v1040
    %v1042 = vpop.f32.mrf.mxu0
    %v1043 = vpop.f32.mrf.mxu0
    %v1044 = vpop.f32.mrf.mxu0
    %1045 = vdwg.mxu0
    %v1046 = vmax.f32 %v1041, 0.0
    %vm1047 = vcmask 523264
    %1048 = vst.msk [vmem:[#allocation4] sm:$0xff] %vm1047, %v1046
    // Predicated region
    $region18: #{tpu_custom_call.1} parent=1 // pred_check
      _
    $region19: #{tpu_custom_call.1} parent=1 // pred_check_branch
      %1050 = sbr.rel (0) target = $region21
    $region20: #{tpu_custom_call.1} parent=1 // pred_region
      %s1052 = ssub.s32 128, 128
      %1053 = vsyncadd [#allocation5], %s1052
      %s1055 = sshll.u32 [#allocation4], 4
      %s1056 = int_to_ptr.vmem [resolvable:$true] %s1055
      %1058 = dma.vmem_to_hbm [thread:$0]  %s1056, 128, %s5, [#allocation5]
    $region21: #{tpu_custom_call.1} parent=1 // pred_fallthru
      _
    // Predicated region
    $region22: #{tpu_custom_call.1} parent=1 // pred_check
      _
    $region23: #{tpu_custom_call.1} parent=1 // pred_check_branch
      %1060 = sbr.rel (0) target = $region25
    $region24: #{tpu_custom_call.1} parent=1 // pred_region
      %1061 = dma.done [#allocation5], 128
    $region25: #{tpu_custom_call.1} parent=1 // pred_fallthru
      _
    %1062 = vsyncpa [#allocation5], 1

</llo_original>
